<compile_context>
chip_gen: v5e
topology: v5e:2x2
jax: 0.10.0
libtpu: 0.0.40
codegen_flags: <defaults>
</compile_context>

<pallas_src>
import jax
import jax.numpy as jnp
from jax.experimental import pallas as pl
from jax.experimental.pallas import tpu as pltpu

BN_EPS = 1e-5
_NEG_MASK = -1e30  # finite "minus infinity" for padded logit columns


def _round_up(n, k):
    return ((n + k - 1) // k) * k


# ----------------------------------------------------------------------------
# D_x > 0 branch.
# ----------------------------------------------------------------------------
def qzhat_forward_cov(cat_p, x, params, block_m=512):
    """qZhatModel.forward with D_x > 0. Returns scalar loss (shape ())."""
    w1, b1, gamma, beta, w2, b2 = params
    del b1  # exactly cancelled by training-mode BatchNorm (mean subtraction)

    m, d_x = x.shape
    d_h = w1.shape[1]
    zhat = w2.shape[1]

    # Lane-dense padded feature widths.
    d_pad = _round_up(d_h, 128)
    z_pad = _round_up(zhat, 128)

    # Batch tile size (multiple of 8) and padded batch.
    tm = min(block_m, _round_up(m, 8))
    m_pad = _round_up(m, tm)
    n_tiles = m_pad // tm
    inv_m = 1.0 / float(m)  # divide by the REAL batch size, not the padded one

    # Host-side padding (zeros; padded rows/cols contribute exactly 0).
    x_p = jnp.pad(x, ((0, m_pad - m), (0, 0)))
    cat_p_p = jnp.pad(cat_p, ((0, m_pad - m), (0, z_pad - zhat)))
    w1_p = jnp.pad(w1, ((0, 0), (0, d_pad - d_h)))
    g_p = jnp.pad(gamma, ((0, 0), (0, d_pad - d_h)), constant_values=1.0)
    be_p = jnp.pad(beta, ((0, 0), (0, d_pad - d_h)))
    w2_p = jnp.pad(w2, ((0, d_pad - d_h), (0, z_pad - zhat)))
    # Padded logit columns get -1e30 so they vanish in log-softmax.
    b2_p = jnp.pad(b2, ((0, 0), (0, z_pad - zhat)), constant_values=_NEG_MASK)

    def kernel(x_ref, w1_ref, g_ref, be_ref, w2_ref, b2_ref, cp_ref, out_ref,
               sum_h, sum_h2, scale, shift, loss_acc):
        p = pl.program_id(0)   # phase: 0 = BN stats, 1 = normalize + loss
        i = pl.program_id(1)   # batch tile
        nt = pl.num_programs(1)
        ones_row = jnp.ones((1, tm), jnp.float32)

        @pl.when(jnp.logical_and(p == 0, i == 0))
        def _init():
            sum_h[...] = jnp.zeros_like(sum_h)
            sum_h2[...] = jnp.zeros_like(sum_h2)

        @pl.when(p == 0)
        def _stats_pass():
            # Linear(D_x -> d_pad), no bias (cancelled by BN).
            h = jnp.dot(x_ref[...], w1_ref[...],
                        preferred_element_type=jnp.float32)
            # Batch-axis reductions on the MXU (ones-row matmul), fused single
            # pass for sum and sum-of-squares.
            sum_h[...] += jnp.dot(ones_row, h,
                                  preferred_element_type=jnp.float32)
            sum_h2[...] += jnp.dot(ones_row, h * h,
                                   preferred_element_type=jnp.float32)

        @pl.when(jnp.logical_and(p == 1, i == 0))
        def _fold_affine():
            mean = sum_h[...] * inv_m
            var = jnp.maximum(sum_h2[...] * inv_m - mean * mean, 0.0)
            s = g_ref[...] * jax.lax.rsqrt(var + BN_EPS)
            scale[...] = s
            shift[...] = be_ref[...] - mean * s
            loss_acc[...] = jnp.zeros_like(loss_acc)

        @pl.when(p == 1)
        def _loss_pass():
            h = jnp.dot(x_ref[...], w1_ref[...],
                        preferred_element_type=jnp.float32)
            # BN folded into one FMA, then ReLU.
            h = jnp.maximum(h * scale[...] + shift[...], 0.0)
            logits = jnp.dot(h, w2_ref[...],
                             preferred_element_type=jnp.float32) + b2_ref[...]
            # Numerically stable log-softmax (padded cols are ~ -1e30).
            mx = jnp.max(logits, axis=1, keepdims=True)
            shifted = logits - mx
            lse = jnp.log(jnp.sum(jnp.exp(shifted), axis=1, keepdims=True))
            log_q = shifted - lse
            prod = cp_ref[...] * log_q          # padded rows/cols -> exactly 0
            # Batch reduction on the MXU; accumulate a lane-dense partial.
            loss_acc[...] += jnp.dot(ones_row, prod,
                                     preferred_element_type=jnp.float32)

        @pl.when(jnp.logical_and(p == 1, i == nt - 1))
        def _finalize():
            out_ref[0, 0] = -inv_m * jnp.sum(loss_acc[...])

    grid_spec = pltpu.PrefetchScalarGridSpec(
        num_scalar_prefetch=0,
        grid=(2, n_tiles),
        in_specs=[
            pl.BlockSpec((tm, d_x), lambda p, i: (i, 0)),       # x: streamed
            pl.BlockSpec((d_x, d_pad), lambda p, i: (0, 0)),    # w1: resident
            pl.BlockSpec((1, d_pad), lambda p, i: (0, 0)),      # gamma
            pl.BlockSpec((1, d_pad), lambda p, i: (0, 0)),      # beta
            pl.BlockSpec((d_pad, z_pad), lambda p, i: (0, 0)),  # w2
            pl.BlockSpec((1, z_pad), lambda p, i: (0, 0)),      # b2 (masked pad)
            # cat_p only needed in phase 1: constant block index during phase 0
            # so its tiles are not re-fetched there.
            pl.BlockSpec((tm, z_pad), lambda p, i: (i * p, 0)),
        ],
        out_specs=pl.BlockSpec((1, 1), lambda p, i: (0, 0),
                               memory_space=pltpu.MemorySpace.SMEM),
        scratch_shapes=[
            pltpu.VMEM((1, d_pad), jnp.float32),   # sum(h)
            pltpu.VMEM((1, d_pad), jnp.float32),   # sum(h*h)
            pltpu.VMEM((1, d_pad), jnp.float32),   # folded BN scale
            pltpu.VMEM((1, d_pad), jnp.float32),   # folded BN shift
            pltpu.VMEM((1, z_pad), jnp.float32),   # loss partial accumulator
        ],
    )

    cost = pl.CostEstimate(
        flops=int(4 * m_pad * d_x * d_pad + 2 * m_pad * d_pad * z_pad
                  + 8 * m_pad * (d_pad + z_pad)),
        transcendentals=int(m_pad * z_pad + m_pad + d_pad),
        bytes_accessed=int(4 * (2 * m_pad * d_x + m_pad * z_pad
                                + d_x * d_pad + d_pad * z_pad
                                + 2 * d_pad + 2 * z_pad) + 4),
    )

    out = pl.pallas_call(
        kernel,
        out_shape=jax.ShapeDtypeStruct((1, 1), jnp.float32),
        grid_spec=grid_spec,
        compiler_params=pltpu.CompilerParams(
            dimension_semantics=("arbitrary", "arbitrary"),
            vmem_limit_bytes=32 * 1024 * 1024,
        ),
        cost_estimate=cost,
    )(x_p, w1_p, g_p, be_p, w2_p, b2_p, cat_p_p)
    return out[0, 0]


# ----------------------------------------------------------------------------
# D_x == 0 branch: plain JAX (per perf review: pallas_call overhead dominates;
# the math reduces to -dot(mean(cat_p, 0), log_softmax(logp))).
# ----------------------------------------------------------------------------
def qzhat_forward_nocov(cat_p, internal_cat_log_p):
    log_q = jax.nn.log_softmax(internal_cat_log_p.reshape(1, -1), axis=1)[0]
    return -jnp.sum(jnp.mean(cat_p, axis=0) * log_q)


# ----------------------------------------------------------------------------
# Pure-JAX references (faithful to the PyTorch module, incl. the b1 bias).
# ----------------------------------------------------------------------------
def _ref_cov(cat_p, x, params):
    w1, b1, gamma, beta, w2, b2 = params
    h = x @ w1 + b1
    mean = h.mean(axis=0, keepdims=True)
    var = ((h - mean) ** 2).mean(axis=0, keepdims=True)
    h = (h - mean) / jnp.sqrt(var + BN_EPS) * gamma + beta
    h = jnp.maximum(h, 0.0)
    logits = h @ w2 + b2
    log_q = jax.nn.log_softmax(logits, axis=1)
    return -(cat_p * log_q).sum(axis=1).mean()


def _ref_nocov(cat_p, logp):
    log_q = jax.nn.log_softmax(logp.reshape(1, -1), axis=1)
    return -(cat_p * log_q).sum(axis=1).mean()


# ----------------------------------------------------------------------------
# Deterministic parameter construction (mirrors the module's __init__ shapes).
# ----------------------------------------------------------------------------
def make_params(key, d_x, zhat_dim):
    d_h = max(10, d_x // 2)  # KLayerNet D_H for the D_x > 0 branch
    k1, k2, k3, k4 = jax.random.split(key, 4)
    bnd1 = 1.0 / jnp.sqrt(d_x)
    bnd2 = 1.0 / jnp.sqrt(d_h)
    w1 = jax.random.uniform(k1, (d_x, d_h), jnp.float32, -bnd1, bnd1)
    b1 = jax.random.uniform(k2, (1, d_h), jnp.float32, -bnd1, bnd1)
    gamma = jnp.ones((1, d_h), jnp.float32)   # BatchNorm1d default init
    beta = jnp.zeros((1, d_h), jnp.float32)
    w2 = jax.random.uniform(k3, (d_h, zhat_dim), jnp.float32, -bnd2, bnd2)
    b2 = jax.random.uniform(k4, (1, zhat_dim), jnp.float32, -bnd2, bnd2)
    return (w1, b1, gamma, beta, w2, b2)


if __name__ == "__main__":
    key = jax.random.PRNGKey(0)
    kx, kp, kparams, klogp, kx2, kp2, kparams2 = jax.random.split(key, 7)

    # --- small case: single tile --------------------------------------------
    m, d_x, zhat_dim = 8, 8, 4
    x = jax.random.normal(kx, (m, d_x), jnp.float32)
    cat_p = jax.nn.softmax(jax.random.normal(kp, (m, zhat_dim), jnp.float32), axis=1)
    params = make_params(kparams, d_x, zhat_dim)
    internal_cat_log_p = jax.random.uniform(klogp, (zhat_dim,), jnp.float32)

    loss_cov = jax.block_until_ready(qzhat_forward_cov(cat_p, x, params))
    ref_cov = _ref_cov(cat_p, x, params)
    assert jnp.allclose(loss_cov, ref_cov, atol=2e-5, rtol=2e-5), (loss_cov, ref_cov)

    # --- larger case: multiple batch tiles + row/column padding --------------
    m2, d_x2, zhat2 = 300, 16, 7
    x2 = jax.random.normal(kx2, (m2, d_x2), jnp.float32)
    cat_p2 = jax.nn.softmax(jax.random.normal(kp2, (m2, zhat2), jnp.float32), axis=1)
    params2 = make_params(kparams2, d_x2, zhat2)

    loss_cov2 = jax.block_until_ready(qzhat_forward_cov(cat_p2, x2, params2, block_m=128))
    ref_cov2 = _ref_cov(cat_p2, x2, params2)
    assert jnp.allclose(loss_cov2, ref_cov2, atol=2e-5, rtol=2e-5), (loss_cov2, ref_cov2)

    # --- D_x == 0 branch ------------------------------------------------------
    loss_nocov = jax.block_until_ready(qzhat_forward_nocov(cat_p, internal_cat_log_p))
    ref_nocov = _ref_nocov(cat_p, internal_cat_log_p)
    assert jnp.allclose(loss_nocov, ref_nocov, atol=2e-5, rtol=2e-5), (loss_nocov, ref_nocov)

    print("KERNEL_OK")
</pallas_src>

<mosaic_0001>
module attributes {stable_mosaic.version = 11 : i64} {
  func.func @kernel(%arg0: i32, %arg1: i32, %arg2: memref<8x8xf32, #tpu.memory_space<vmem>>, %arg3: memref<8x128xf32, #tpu.memory_space<vmem>>, %arg4: memref<1x128xf32, #tpu.memory_space<vmem>>, %arg5: memref<1x128xf32, #tpu.memory_space<vmem>>, %arg6: memref<128x128xf32, #tpu.memory_space<vmem>>, %arg7: memref<1x128xf32, #tpu.memory_space<vmem>>, %arg8: memref<8x128xf32, #tpu.memory_space<vmem>>, %arg9: memref<1x1xf32, #tpu.memory_space<smem>>, %arg10: memref<1x128xf32, #tpu.memory_space<vmem>>, %arg11: memref<1x128xf32, #tpu.memory_space<vmem>>, %arg12: memref<1x128xf32, #tpu.memory_space<vmem>>, %arg13: memref<1x128xf32, #tpu.memory_space<vmem>>, %arg14: memref<1x128xf32, #tpu.memory_space<vmem>>) attributes {dimension_semantics = [#tpu.dimension_semantics<arbitrary>, #tpu.dimension_semantics<arbitrary>], iteration_bounds = array<i64: 2, 1>, scalar_prefetch = 0 : i64, scratch_operands = 5 : i64, tpu.core_type = #tpu.core_type<tc>, window_params = [{transform_indices = @transform_0, window_bounds = array<i64: 8, 8>}, {pipeline_mode = #tpu.pipeline_mode<synchronous>, transform_indices = @transform_1, window_bounds = array<i64: 8, 128>}, {pipeline_mode = #tpu.pipeline_mode<synchronous>, transform_indices = @transform_2, window_bounds = array<i64: 1, 128>}, {pipeline_mode = #tpu.pipeline_mode<synchronous>, transform_indices = @transform_3, window_bounds = array<i64: 1, 128>}, {pipeline_mode = #tpu.pipeline_mode<synchronous>, transform_indices = @transform_4, window_bounds = array<i64: 128, 128>}, {pipeline_mode = #tpu.pipeline_mode<synchronous>, transform_indices = @transform_5, window_bounds = array<i64: 1, 128>}, {transform_indices = @transform_6, window_bounds = array<i64: 8, 128>}, {transform_indices = @transform_7, window_bounds = array<i64: 1, 1>}]} {
    %cst = arith.constant 1.000000e+00 : f32
    %0 = vector.broadcast %cst : f32 to vector<1x8xf32>
    %c0_i32 = arith.constant 0 : i32
    %1 = arith.cmpi eq, %arg0, %c0_i32 : i32
    %c0_i32_0 = arith.constant 0 : i32
    %2 = arith.cmpi eq, %arg1, %c0_i32_0 : i32
    %3 = arith.andi %1, %2 : i1
    %4 = arith.extui %3 : i1 to i32
    %c0_i32_1 = arith.constant 0 : i32
    %5 = arith.cmpi ne, %4, %c0_i32_1 : i32
    scf.if %5 {
      %cst_11 = arith.constant 0.000000e+00 : f32
      %22 = vector.broadcast %cst_11 : f32 to vector<1x128xf32>
      %c0 = arith.constant 0 : index
      %c0_12 = arith.constant 0 : index
      %23 = vector.load %arg10[%c0, %c0_12] : memref<1x128xf32, #tpu.memory_space<vmem>>, vector<1x128xf32>
      tpu.vector_store %arg10[%c0, %c0_12], %22 {strides = array<i32>} : memref<1x128xf32, #tpu.memory_space<vmem>>, vector<1x128xf32>,
      %cst_13 = arith.constant 0.000000e+00 : f32
      %24 = vector.broadcast %cst_13 : f32 to vector<1x128xf32>
      %c0_14 = arith.constant 0 : index
      %c0_15 = arith.constant 0 : index
      %25 = vector.load %arg11[%c0_14, %c0_15] : memref<1x128xf32, #tpu.memory_space<vmem>>, vector<1x128xf32>
      tpu.vector_store %arg11[%c0_14, %c0_15], %24 {strides = array<i32>} : memref<1x128xf32, #tpu.memory_space<vmem>>, vector<1x128xf32>,
    } else {
    }
    %c0_i32_2 = arith.constant 0 : i32
    %6 = arith.cmpi eq, %arg0, %c0_i32_2 : i32
    %7 = arith.extui %6 : i1 to i32
    %c0_i32_3 = arith.constant 0 : i32
    %8 = arith.cmpi ne, %7, %c0_i32_3 : i32
    scf.if %8 {
      %c0 = arith.constant 0 : index
      %c0_11 = arith.constant 0 : index
      %22 = vector.load %arg2[%c0, %c0_11] : memref<8x8xf32, #tpu.memory_space<vmem>>, vector<8x8xf32>
      %c0_12 = arith.constant 0 : index
      %c0_13 = arith.constant 0 : index
      %23 = vector.load %arg3[%c0_12, %c0_13] : memref<8x128xf32, #tpu.memory_space<vmem>>, vector<8x128xf32>
      %cst_14 = arith.constant dense<0.000000e+00> : vector<8x128xf32>
      %24 = tpu.matmul %22, %23, %cst_14 {dimension_numbers = #tpu.dot_dimension_numbers<[1], [0], [0], [1], [0, 0, 1, 1], [], []>} : vector<8x8xf32>, vector<8x128xf32>, vector<8x128xf32> -> vector<8x128xf32>
      %c0_15 = arith.constant 0 : index
      %c0_16 = arith.constant 0 : index
      %25 = vector.load %arg10[%c0_15, %c0_16] : memref<1x128xf32, #tpu.memory_space<vmem>>, vector<1x128xf32>
      %cst_17 = arith.constant dense<0.000000e+00> : vector<1x128xf32>
      %26 = tpu.matmul %0, %24, %cst_17 {dimension_numbers = #tpu.dot_dimension_numbers<[1], [0], [0], [1], [0, 0, 1, 1], [], []>} : vector<1x8xf32>, vector<8x128xf32>, vector<1x128xf32> -> vector<1x128xf32>
      %27 = arith.addf %25, %26 : vector<1x128xf32>
      %c0_18 = arith.constant 0 : index
      %c0_19 = arith.constant 0 : index
      %28 = vector.load %arg10[%c0_18, %c0_19] : memref<1x128xf32, #tpu.memory_space<vmem>>, vector<1x128xf32>
      tpu.vector_store %arg10[%c0_18, %c0_19], %27 {strides = array<i32>} : memref<1x128xf32, #tpu.memory_space<vmem>>, vector<1x128xf32>,
      %c0_20 = arith.constant 0 : index
      %c0_21 = arith.constant 0 : index
      %29 = vector.load %arg11[%c0_20, %c0_21] : memref<1x128xf32, #tpu.memory_space<vmem>>, vector<1x128xf32>
      %30 = arith.mulf %24, %24 : vector<8x128xf32>
      %cst_22 = arith.constant dense<0.000000e+00> : vector<1x128xf32>
      %31 = tpu.matmul %0, %30, %cst_22 {dimension_numbers = #tpu.dot_dimension_numbers<[1], [0], [0], [1], [0, 0, 1, 1], [], []>} : vector<1x8xf32>, vector<8x128xf32>, vector<1x128xf32> -> vector<1x128xf32>
      %32 = arith.addf %29, %31 : vector<1x128xf32>
      %c0_23 = arith.constant 0 : index
      %c0_24 = arith.constant 0 : index
      %33 = vector.load %arg11[%c0_23, %c0_24] : memref<1x128xf32, #tpu.memory_space<vmem>>, vector<1x128xf32>
      tpu.vector_store %arg11[%c0_23, %c0_24], %32 {strides = array<i32>} : memref<1x128xf32, #tpu.memory_space<vmem>>, vector<1x128xf32>,
    } else {
    }
    %c1_i32 = arith.constant 1 : i32
    %9 = arith.cmpi eq, %arg0, %c1_i32 : i32
    %c0_i32_4 = arith.constant 0 : i32
    %10 = arith.cmpi eq, %arg1, %c0_i32_4 : i32
    %11 = arith.andi %9, %10 : i1
    %12 = arith.extui %11 : i1 to i32
    %c0_i32_5 = arith.constant 0 : i32
    %13 = arith.cmpi ne, %12, %c0_i32_5 : i32
    scf.if %13 {
      %c0 = arith.constant 0 : index
      %c0_11 = arith.constant 0 : index
      %22 = vector.load %arg10[%c0, %c0_11] : memref<1x128xf32, #tpu.memory_space<vmem>>, vector<1x128xf32>
      %cst_12 = arith.constant 1.250000e-01 : f32
      %23 = vector.broadcast %cst_12 : f32 to vector<1x128xf32>
      %24 = arith.mulf %22, %23 : vector<1x128xf32>
      %c0_13 = arith.constant 0 : index
      %c0_14 = arith.constant 0 : index
      %25 = vector.load %arg11[%c0_13, %c0_14] : memref<1x128xf32, #tpu.memory_space<vmem>>, vector<1x128xf32>
      %cst_15 = arith.constant 1.250000e-01 : f32
      %26 = vector.broadcast %cst_15 : f32 to vector<1x128xf32>
      %27 = arith.mulf %25, %26 : vector<1x128xf32>
      %28 = arith.mulf %24, %24 : vector<1x128xf32>
      %29 = arith.subf %27, %28 : vector<1x128xf32>
      %cst_16 = arith.constant 0.000000e+00 : f32
      %30 = vector.broadcast %cst_16 : f32 to vector<1x128xf32>
      %31 = arith.maximumf %29, %30 : vector<1x128xf32>
      %c0_17 = arith.constant 0 : index
      %c0_18 = arith.constant 0 : index
      %32 = vector.load %arg4[%c0_17, %c0_18] : memref<1x128xf32, #tpu.memory_space<vmem>>, vector<1x128xf32>
      %cst_19 = arith.constant 9.99999974E-6 : f32
      %33 = vector.broadcast %cst_19 : f32 to vector<1x128xf32>
      %34 = arith.addf %31, %33 : vector<1x128xf32>
      %35 = math.rsqrt %34 : vector<1x128xf32>
      %36 = arith.mulf %32, %35 : vector<1x128xf32>
      %c0_20 = arith.constant 0 : index
      %c0_21 = arith.constant 0 : index
      %37 = vector.load %arg12[%c0_20, %c0_21] : memref<1x128xf32, #tpu.memory_space<vmem>>, vector<1x128xf32>
      tpu.vector_store %arg12[%c0_20, %c0_21], %36 {strides = array<i32>} : memref<1x128xf32, #tpu.memory_space<vmem>>, vector<1x128xf32>,
      %c0_22 = arith.constant 0 : index
      %c0_23 = arith.constant 0 : index
      %38 = vector.load %arg5[%c0_22, %c0_23] : memref<1x128xf32, #tpu.memory_space<vmem>>, vector<1x128xf32>
      %39 = arith.mulf %24, %36 : vector<1x128xf32>
      %40 = arith.subf %38, %39 : vector<1x128xf32>
      %c0_24 = arith.constant 0 : index
      %c0_25 = arith.constant 0 : index
      %41 = vector.load %arg13[%c0_24, %c0_25] : memref<1x128xf32, #tpu.memory_space<vmem>>, vector<1x128xf32>
      tpu.vector_store %arg13[%c0_24, %c0_25], %40 {strides = array<i32>} : memref<1x128xf32, #tpu.memory_space<vmem>>, vector<1x128xf32>,
      %cst_26 = arith.constant 0.000000e+00 : f32
      %42 = vector.broadcast %cst_26 : f32 to vector<1x128xf32>
      %c0_27 = arith.constant 0 : index
      %c0_28 = arith.constant 0 : index
      %43 = vector.load %arg14[%c0_27, %c0_28] : memref<1x128xf32, #tpu.memory_space<vmem>>, vector<1x128xf32>
      tpu.vector_store %arg14[%c0_27, %c0_28], %42 {strides = array<i32>} : memref<1x128xf32, #tpu.memory_space<vmem>>, vector<1x128xf32>,
    } else {
    }
    %c1_i32_6 = arith.constant 1 : i32
    %14 = arith.cmpi eq, %arg0, %c1_i32_6 : i32
    %15 = arith.extui %14 : i1 to i32
    %c0_i32_7 = arith.constant 0 : i32
    %16 = arith.cmpi ne, %15, %c0_i32_7 : i32
    scf.if %16 {
      %c0 = arith.constant 0 : index
      %c0_11 = arith.constant 0 : index
      %22 = vector.load %arg2[%c0, %c0_11] : memref<8x8xf32, #tpu.memory_space<vmem>>, vector<8x8xf32>
      %c0_12 = arith.constant 0 : index
      %c0_13 = arith.constant 0 : index
      %23 = vector.load %arg3[%c0_12, %c0_13] : memref<8x128xf32, #tpu.memory_space<vmem>>, vector<8x128xf32>
      %cst_14 = arith.constant dense<0.000000e+00> : vector<8x128xf32>
      %24 = tpu.matmul %22, %23, %cst_14 {dimension_numbers = #tpu.dot_dimension_numbers<[1], [0], [0], [1], [0, 0, 1, 1], [], []>} : vector<8x8xf32>, vector<8x128xf32>, vector<8x128xf32> -> vector<8x128xf32>
      %c0_15 = arith.constant 0 : index
      %c0_16 = arith.constant 0 : index
      %25 = vector.load %arg12[%c0_15, %c0_16] : memref<1x128xf32, #tpu.memory_space<vmem>>, vector<1x128xf32>
      %26 = vector.broadcast %25 : vector<1x128xf32> to vector<8x128xf32>
      %27 = arith.mulf %24, %26 : vector<8x128xf32>
      %c0_17 = arith.constant 0 : index
      %c0_18 = arith.constant 0 : index
      %28 = vector.load %arg13[%c0_17, %c0_18] : memref<1x128xf32, #tpu.memory_space<vmem>>, vector<1x128xf32>
      %29 = vector.broadcast %28 : vector<1x128xf32> to vector<8x128xf32>
      %30 = arith.addf %27, %29 : vector<8x128xf32>
      %cst_19 = arith.constant 0.000000e+00 : f32
      %31 = vector.broadcast %cst_19 : f32 to vector<8x128xf32>
      %32 = arith.maximumf %30, %31 : vector<8x128xf32>
      %c0_20 = arith.constant 0 : index
      %c0_21 = arith.constant 0 : index
      %33 = vector.load %arg6[%c0_20, %c0_21] : memref<128x128xf32, #tpu.memory_space<vmem>>, vector<128x128xf32>
      %cst_22 = arith.constant dense<0.000000e+00> : vector<8x128xf32>
      %34 = tpu.matmul %32, %33, %cst_22 {dimension_numbers = #tpu.dot_dimension_numbers<[1], [0], [0], [1], [0, 0, 1, 1], [], []>} : vector<8x128xf32>, vector<128x128xf32>, vector<8x128xf32> -> vector<8x128xf32>
      %c0_23 = arith.constant 0 : index
      %c0_24 = arith.constant 0 : index
      %35 = vector.load %arg7[%c0_23, %c0_24] : memref<1x128xf32, #tpu.memory_space<vmem>>, vector<1x128xf32>
      %36 = vector.broadcast %35 : vector<1x128xf32> to vector<8x128xf32>
      %37 = arith.addf %34, %36 : vector<8x128xf32>
      %cst_25 = arith.constant dense<0xFF800000> : vector<8xf32>
      %38 = vector.multi_reduction <maximumf>, %37, %cst_25 [1] : vector<8x128xf32> to vector<8xf32>
      %39 = vector.shape_cast %38 : vector<8xf32> to vector<8x1xf32>
      %40 = vector.broadcast %39 : vector<8x1xf32> to vector<8x128xf32>
      %41 = arith.subf %37, %40 : vector<8x128xf32>
      %42 = math.exp %41 : vector<8x128xf32>
      %cst_26 = arith.constant dense<0.000000e+00> : vector<8xf32>
      %43 = vector.multi_reduction <add>, %42, %cst_26 [1] : vector<8x128xf32> to vector<8xf32>
      %44 = vector.shape_cast %43 : vector<8xf32> to vector<8x1xf32>
      %45 = math.log %44 : vector<8x1xf32>
      %46 = vector.broadcast %45 : vector<8x1xf32> to vector<8x128xf32>
      %47 = arith.subf %41, %46 : vector<8x128xf32>
      %c0_27 = arith.constant 0 : index
      %c0_28 = arith.constant 0 : index
      %48 = vector.load %arg8[%c0_27, %c0_28] : memref<8x128xf32, #tpu.memory_space<vmem>>, vector<8x128xf32>
      %49 = arith.mulf %48, %47 : vector<8x128xf32>
      %c0_29 = arith.constant 0 : index
      %c0_30 = arith.constant 0 : index
      %50 = vector.load %arg14[%c0_29, %c0_30] : memref<1x128xf32, #tpu.memory_space<vmem>>, vector<1x128xf32>
      %cst_31 = arith.constant dense<0.000000e+00> : vector<1x128xf32>
      %51 = tpu.matmul %0, %49, %cst_31 {dimension_numbers = #tpu.dot_dimension_numbers<[1], [0], [0], [1], [0, 0, 1, 1], [], []>} : vector<1x8xf32>, vector<8x128xf32>, vector<1x128xf32> -> vector<1x128xf32>
      %52 = arith.addf %50, %51 : vector<1x128xf32>
      %c0_32 = arith.constant 0 : index
      %c0_33 = arith.constant 0 : index
      %53 = vector.load %arg14[%c0_32, %c0_33] : memref<1x128xf32, #tpu.memory_space<vmem>>, vector<1x128xf32>
      tpu.vector_store %arg14[%c0_32, %c0_33], %52 {strides = array<i32>} : memref<1x128xf32, #tpu.memory_space<vmem>>, vector<1x128xf32>,
    } else {
    }
    %c1_i32_8 = arith.constant 1 : i32
    %17 = arith.cmpi eq, %arg0, %c1_i32_8 : i32
    %c0_i32_9 = arith.constant 0 : i32
    %18 = arith.cmpi eq, %arg1, %c0_i32_9 : i32
    %19 = arith.andi %17, %18 : i1
    %20 = arith.extui %19 : i1 to i32
    %c0_i32_10 = arith.constant 0 : i32
    %21 = arith.cmpi ne, %20, %c0_i32_10 : i32
    scf.if %21 {
      %c0 = arith.constant 0 : index
      %c0_11 = arith.constant 0 : index
      %22 = vector.load %arg14[%c0, %c0_11] : memref<1x128xf32, #tpu.memory_space<vmem>>, vector<1x128xf32>
      %23 = vector.shape_cast %22 : vector<1x128xf32> to vector<1x1x128xf32>
      %cst_12 = arith.constant dense<0.000000e+00> : vector<1xf32>
      %24 = vector.multi_reduction <add>, %23, %cst_12 [1, 2] : vector<1x1x128xf32> to vector<1xf32>
      %25 = vector.shape_cast %24 : vector<1xf32> to vector<1x1x1xf32>
      %26 = vector.extract %25[0, 0, 0] : f32 from vector<1x1x1xf32>
      %cst_13 = arith.constant -1.250000e-01 : f32
      %27 = arith.mulf %cst_13, %26 : f32
      %c0_14 = arith.constant 0 : index
      %c0_15 = arith.constant 0 : index
      %28 = memref.load %arg9[%c0_14, %c0_15] : memref<1x1xf32, #tpu.memory_space<smem>>
      memref.store %27, %arg9[%c0_14, %c0_15] : memref<1x1xf32, #tpu.memory_space<smem>>
    } else {
    }
    return
  }
  func.func @transform_0(%arg0: i32, %arg1: i32) -> (i32, i32) {
    %c0_i32 = arith.constant 0 : i32
    %c0_i32_0 = arith.constant 0 : i32
    return %arg1, %c0_i32 : i32, i32
  }
  func.func @transform_1(%arg0: i32, %arg1: i32) -> (i32, i32) {
    %c0_i32 = arith.constant 0 : i32
    %c0_i32_0 = arith.constant 0 : i32
    %c0_i32_1 = arith.constant 0 : i32
    return %c0_i32, %c0_i32_0 : i32, i32
  }
  func.func @transform_2(%arg0: i32, %arg1: i32) -> (i32, i32) {
    %c0_i32 = arith.constant 0 : i32
    %c0_i32_0 = arith.constant 0 : i32
    %c0_i32_1 = arith.constant 0 : i32
    return %c0_i32, %c0_i32_0 : i32, i32
  }
  func.func @transform_3(%arg0: i32, %arg1: i32) -> (i32, i32) {
    %c0_i32 = arith.constant 0 : i32
    %c0_i32_0 = arith.constant 0 : i32
    %c0_i32_1 = arith.constant 0 : i32
    return %c0_i32, %c0_i32_0 : i32, i32
  }
  func.func @transform_4(%arg0: i32, %arg1: i32) -> (i32, i32) {
    %c0_i32 = arith.constant 0 : i32
    %c0_i32_0 = arith.constant 0 : i32
    %c0_i32_1 = arith.constant 0 : i32
    return %c0_i32, %c0_i32_0 : i32, i32
  }
  func.func @transform_5(%arg0: i32, %arg1: i32) -> (i32, i32) {
    %c0_i32 = arith.constant 0 : i32
    %c0_i32_0 = arith.constant 0 : i32
    %c0_i32_1 = arith.constant 0 : i32
    return %c0_i32, %c0_i32_0 : i32, i32
  }
  func.func @transform_6(%arg0: i32, %arg1: i32) -> (i32, i32) {
    %0 = arith.muli %arg1, %arg0 : i32
    %c0_i32 = arith.constant 0 : i32
    %c0_i32_0 = arith.constant 0 : i32
    return %0, %c0_i32 : i32, i32
  }
  func.func @transform_7(%arg0: i32, %arg1: i32) -> (i32, i32) {
    %c0_i32 = arith.constant 0 : i32
    %c0_i32_0 = arith.constant 0 : i32
    %c0_i32_1 = arith.constant 0 : i32
    return %c0_i32, %c0_i32_0 : i32, i32
  }
}

</mosaic_0001>

<llo_original>
// kernel: tpu_custom_call.1
$region0: #{tpu_custom_call.1}
  #allocation0 [shape = 'u32[]', space=smem, size = 0x4, offset = 0x4, fixed_abs, tag = 'smem constant byte address 0x4 - core index']
  #allocation1 [shape = 'u32[72,128]{1,0:T(1,128)}', space=vmem, size = 0x9000, scoped, tag = 'internal scratch']
  #allocation2 [shape = 'f32[1,128]{1,0:T(1,128)}', space=vmem, size = 0x200, scoped, tag = 'scratch operand']
  #allocation3 [shape = 'f32[1,128]{1,0:T(1,128)}', space=vmem, size = 0x200, scoped, tag = 'scratch operand']
  #allocation4 [shape = 'f32[1,128]{1,0:T(1,128)}', space=vmem, size = 0x200, scoped, tag = 'scratch operand']
  #allocation5 [shape = 'f32[1,128]{1,0:T(1,128)}', space=vmem, size = 0x200, scoped, tag = 'scratch operand']
  #allocation6 [shape = 'f32[1,128]{1,0:T(1,128)}', space=vmem, size = 0x200, scoped, tag = 'scratch operand']
  %s0 = inlined_call_operand.hbm [shape: f32[8,8], index: 0, kind: input, shape index: {}]
  %s1 = inlined_call_operand.hbm [shape: f32[8,128], index: 1, kind: input, shape index: {}]
  %s2 = inlined_call_operand.vmem [shape: f32[1,128], index: 2, kind: input, shape index: {}]
  %s3 = inlined_call_operand.vmem [shape: f32[1,128], index: 3, kind: input, shape index: {}]
  %s4 = inlined_call_operand.hbm [shape: f32[128,128], index: 4, kind: input, shape index: {}]
  %s5 = inlined_call_operand.vmem [shape: f32[1,128], index: 5, kind: input, shape index: {}]
  %s6 = inlined_call_operand.hbm [shape: f32[8,128], index: 6, kind: input, shape index: {}]
  %s7 = inlined_call_operand.hbm [shape: f32[1,1], index: 7, kind: output, shape index: {}]
  %s8 = sld [smem:[#allocation0]]
  $region97: #{tpu_custom_call.1} parent=0
    _
  %s10 = ssub.s32 1, %s8
  %s11 = scalar_select 0, %s10, %s8
  $region1: #{tpu_custom_call.1} parent=0
    #allocation7 [shape = 'u8[4096]{0}', space=vmem, size = 0x1000, scoped, tag = 'input window, operand 0, single buffered']
    #allocation8 [shape = 's32[2]{0}', space=sflag, size = 0x8, scoped, tag = 'scoped memory for tpu_custom_call.1']
    #allocation9 [shape = 's32[2]{0}', space=sflag, size = 0x8, scoped, tag = 'scoped memory for tpu_custom_call.1']
    #allocation10 [shape = 'u8[4096]{0}', space=vmem, size = 0x1000, scoped, tag = 'input window, operand 1, single buffered']
    #allocation11 [shape = 's32[1]{0}', space=sflag, size = 0x4, scoped, tag = 'scoped memory for tpu_custom_call.1']
    #allocation12 [shape = 'u8[65536]{0}', space=vmem, size = 0x10000, scoped, tag = 'input window, operand 4, single buffered']
    #allocation13 [shape = 'u8[8192]{0}', space=vmem, size = 0x2000, scoped, tag = 'input window, operand 6']
    #allocation14 [shape = 's32[2]{0}', space=sflag, size = 0x8, scoped, tag = 'scoped memory for tpu_custom_call.1']
    #allocation15 [shape = 'u8[512]{0}', space=smem, size = 0x200, scoped, tag = 'output window, operand 0, single buffered']
    %12 = vsyncpa [#allocation8], 0
    %13 = vsyncpa [#allocation11], 0
    %14 = vsyncpa [#allocation14], 0
    %s15 = scalar_lea.sflag [#allocation14], 1
    %16 = vsyncpa %s15, 0
    %17 = vsyncpa [#allocation9], 0
    loop: start=0, step=1, limit=4
    $region2: #{tpu_custom_call.1} parent=1 // loop_pre_header
      _
    $region3: #{tpu_custom_call.1} parent=1 // loop_header
      %s19 = sphi 0, %s23
      %p20 = scmp.ge.s32.totalorder %s19, 4
      %s26 = sphi 0, %s38
      %s27 = sphi 0, %s34
      %s28 = sphi 0, %s26
      %s29 = sphi 0, %s27
      %s30 = sphi 0, %s28
      %s31 = sphi 0, %s29
      %s41 = sphi 0, %s43
      %s44 = sphi 0, %s41
      %s45 = sphi 0, %s44
      %s61 = sphi 0, %s45
      %s65 = sphi 0, %s65
      %s67 = sphi 0, %s65
      %s68 = sphi 0, %s67
      %s82 = sphi 0, %s68
      %s86 = sphi 0, %s86
      %s88 = sphi 0, %s86
      %s89 = sphi 0, %s88
      %s103 = sphi 0, %s89
      %s107 = sphi 0, %s107
      %s109 = sphi 0, %s107
      %s110 = sphi 0, %s109
      %s124 = sphi 0, %s110
      %s128 = sphi 0, %s128
      %s130 = sphi 0, %s128
      %s131 = sphi 0, %s130
      %s145 = sphi 0, %s131
      %s149 = sphi 0, %s149
      %s151 = sphi 0, %s149
      %s152 = sphi 0, %s151
      %s166 = sphi 0, %s152
      %s174 = sphi 0, %s176
      %s177 = sphi 0, %s174
      %s178 = sphi 0, %s177
      %s194 = sphi 0, %s178
      %s198 = sphi 0, %s198
      %s200 = sphi 0, %s198
      %s201 = sphi 0, %s200
      %s215 = sphi 0, %s201
    $region4: #{tpu_custom_call.1} parent=1 // loop_header_branch
      %22 = sbr.rel (%p20) target = $region8
    $region5: #{tpu_custom_call.1} parent=1 // loop_body
      %s24 = ssub.s32 %s19, 1
      %s25 = ssub.s32 %s19, 2
      %s32 = sadd.s32 1, %s27
      %p33 = scmp.ge.s32.totalorder %s32, 1
      %s34 = scalar_select %p33, 0, %s32
      %s35 = sadd.s32 1, %s26
      %s36 = scalar_select %p33, %s35, %s26
      %p37 = scmp.ge.s32.totalorder %s36, 2
      %s38 = scalar_select %p37, 0, %s36
      %s39 = ssub.s32 %s27, %s34
      %p40 = scmp.eq.s32.totalorder %s39, 0
      %s42 = sadd.s32 %s41, 1
      %s43 = scalar_select %p40, %s41, %s42
      %p46 = pneg %p40
      %p47 = scmp.eq.s32.totalorder %s19, 1
      %p48 = por %p46, %p47
      %p49 = scmp.ne.s32.totalorder %s41, %s44
      %p50 = scmp.eq.s32.totalorder %s19, 0
      %p51 = por %p49, %p50
      %p52 = scmp.ne.s32.totalorder %s41, %s44
      %p53 = scmp.eq.s32.totalorder %s24, 1
      %p54 = por %p52, %p53
      %p55 = scmp.ne.s32.totalorder %s44, %s45
      %p56 = scmp.eq.s32.totalorder %s24, 0
      %p57 = por %p55, %p56
      %p58 = scmp.ne.s32.totalorder %s44, %s45
      %p59 = scmp.eq.s32.totalorder %s25, 1
      %p60 = por %p58, %p59
      %p62 = scmp.ne.s32.totalorder %s45, %s61
      %p63 = scmp.eq.s32.totalorder %s25, 0
      %p64 = por %p62, %p63
      %s66 = sadd.s32 %s65, 1
      %p69 = scmp.eq.s32.totalorder %s19, 1
      %p70 = scmp.ne.s32.totalorder %s65, %s67
      %p71 = scmp.eq.s32.totalorder %s19, 0
      %p72 = por %p70, %p71
      %p73 = scmp.ne.s32.totalorder %s65, %s67
      %p74 = scmp.eq.s32.totalorder %s24, 1
      %p75 = por %p73, %p74
      %p76 = scmp.ne.s32.totalorder %s67, %s68
      %p77 = scmp.eq.s32.totalorder %s24, 0
      %p78 = por %p76, %p77
      %p79 = scmp.ne.s32.totalorder %s67, %s68
      %p80 = scmp.eq.s32.totalorder %s25, 1
      %p81 = por %p79, %p80
      %p83 = scmp.ne.s32.totalorder %s68, %s82
      %p84 = scmp.eq.s32.totalorder %s25, 0
      %p85 = por %p83, %p84
      %s87 = sadd.s32 %s86, 1
      %p90 = scmp.eq.s32.totalorder %s19, 1
      %p91 = scmp.ne.s32.totalorder %s86, %s88
      %p92 = scmp.eq.s32.totalorder %s19, 0
      %p93 = por %p91, %p92
      %p94 = scmp.ne.s32.totalorder %s86, %s88
      %p95 = scmp.eq.s32.totalorder %s24, 1
      %p96 = por %p94, %p95
      %p97 = scmp.ne.s32.totalorder %s88, %s89
      %p98 = scmp.eq.s32.totalorder %s24, 0
      %p99 = por %p97, %p98
      %p100 = scmp.ne.s32.totalorder %s88, %s89
      %p101 = scmp.eq.s32.totalorder %s25, 1
      %p102 = por %p100, %p101
      %p104 = scmp.ne.s32.totalorder %s89, %s103
      %p105 = scmp.eq.s32.totalorder %s25, 0
      %p106 = por %p104, %p105
      %s108 = sadd.s32 %s107, 1
      %p111 = scmp.eq.s32.totalorder %s19, 1
      %p112 = scmp.ne.s32.totalorder %s107, %s109
      %p113 = scmp.eq.s32.totalorder %s19, 0
      %p114 = por %p112, %p113
      %p115 = scmp.ne.s32.totalorder %s107, %s109
      %p116 = scmp.eq.s32.totalorder %s24, 1
      %p117 = por %p115, %p116
      %p118 = scmp.ne.s32.totalorder %s109, %s110
      %p119 = scmp.eq.s32.totalorder %s24, 0
      %p120 = por %p118, %p119
      %p121 = scmp.ne.s32.totalorder %s109, %s110
      %p122 = scmp.eq.s32.totalorder %s25, 1
      %p123 = por %p121, %p122
      %p125 = scmp.ne.s32.totalorder %s110, %s124
      %p126 = scmp.eq.s32.totalorder %s25, 0
      %p127 = por %p125, %p126
      %s129 = sadd.s32 %s128, 1
      %p132 = scmp.eq.s32.totalorder %s19, 1
      %p133 = scmp.ne.s32.totalorder %s128, %s130
      %p134 = scmp.eq.s32.totalorder %s19, 0
      %p135 = por %p133, %p134
      %p136 = scmp.ne.s32.totalorder %s128, %s130
      %p137 = scmp.eq.s32.totalorder %s24, 1
      %p138 = por %p136, %p137
      %p139 = scmp.ne.s32.totalorder %s130, %s131
      %p140 = scmp.eq.s32.totalorder %s24, 0
      %p141 = por %p139, %p140
      %p142 = scmp.ne.s32.totalorder %s130, %s131
      %p143 = scmp.eq.s32.totalorder %s25, 1
      %p144 = por %p142, %p143
      %p146 = scmp.ne.s32.totalorder %s131, %s145
      %p147 = scmp.eq.s32.totalorder %s25, 0
      %p148 = por %p146, %p147
      %s150 = sadd.s32 %s149, 1
      %p153 = scmp.eq.s32.totalorder %s19, 1
      %p154 = scmp.ne.s32.totalorder %s149, %s151
      %p155 = scmp.eq.s32.totalorder %s19, 0
      %p156 = por %p154, %p155
      %p157 = scmp.ne.s32.totalorder %s149, %s151
      %p158 = scmp.eq.s32.totalorder %s24, 1
      %p159 = por %p157, %p158
      %p160 = scmp.ne.s32.totalorder %s151, %s152
      %p161 = scmp.eq.s32.totalorder %s24, 0
      %p162 = por %p160, %p161
      %p163 = scmp.ne.s32.totalorder %s151, %s152
      %p164 = scmp.eq.s32.totalorder %s25, 1
      %p165 = por %p163, %p164
      %p167 = scmp.ne.s32.totalorder %s152, %s166
      %p168 = scmp.eq.s32.totalorder %s25, 0
      %p169 = por %p167, %p168
      %s170 = smul.u32 %s27, %s26
      %s171 = smul.u32 %s34, %s38
      %s172 = ssub.s32 %s170, %s171
      %p173 = scmp.eq.s32.totalorder %s172, 0
      %s175 = sadd.s32 %s174, 1
      %s176 = scalar_select %p173, %s174, %s175
      %p179 = pneg %p173
      %p180 = scmp.eq.s32.totalorder %s19, 1
      %p181 = por %p179, %p180
      %p182 = scmp.ne.s32.totalorder %s174, %s177
      %p183 = scmp.eq.s32.totalorder %s19, 0
      %p184 = por %p182, %p183
      %p185 = scmp.ne.s32.totalorder %s174, %s177
      %p186 = scmp.eq.s32.totalorder %s24, 1
      %p187 = por %p185, %p186
      %p188 = scmp.ne.s32.totalorder %s177, %s178
      %p189 = scmp.eq.s32.totalorder %s24, 0
      %p190 = por %p188, %p189
      %p191 = scmp.ne.s32.totalorder %s177, %s178
      %p192 = scmp.eq.s32.totalorder %s25, 1
      %p193 = por %p191, %p192
      %p195 = scmp.ne.s32.totalorder %s178, %s194
      %p196 = scmp.eq.s32.totalorder %s25, 0
      %p197 = por %p195, %p196
      %s199 = sadd.s32 %s198, 1
      %p202 = scmp.eq.s32.totalorder %s19, 1
      %p203 = scmp.ne.s32.totalorder %s198, %s200
      %p204 = scmp.eq.s32.totalorder %s19, 0
      %p205 = por %p203, %p204
      %p206 = scmp.ne.s32.totalorder %s198, %s200
      %p207 = scmp.eq.s32.totalorder %s24, 1
      %p208 = por %p206, %p207
      %p209 = scmp.ne.s32.totalorder %s200, %s201
      %p210 = scmp.eq.s32.totalorder %s24, 0
      %p211 = por %p209, %p210
      %p212 = scmp.ne.s32.totalorder %s200, %s201
      %p213 = scmp.eq.s32.totalorder %s25, 1
      %p214 = por %p212, %p213
      %p216 = scmp.ne.s32.totalorder %s201, %s215
      %p217 = scmp.eq.s32.totalorder %s25, 0
      %p218 = por %p216, %p217
      %p219 = scmp.le.s32.totalorder 1, %s19
      %p220 = scmp.lt.s32.totalorder %s19, 3
      %p221 = pnand %p219, %p220
      %p222 = pneg %p221
      // Predicated region
      $region9: #{tpu_custom_call.1} parent=5 // pred_check
        _
      $region10: #{tpu_custom_call.1} parent=5 // pred_check_branch
        %224 = sbr.rel (%p221) target = $region12
      $region11: #{tpu_custom_call.1} parent=5 // pred_region
        %s225 = ssub.s32 %s19, 1
        // Predicated region
        $region13: #{tpu_custom_call.1} parent=11 // pred_check
          %p226 = pneg %p57
        $region14: #{tpu_custom_call.1} parent=11 // pred_check_branch
          %228 = sbr.rel (%p226) target = $region16
        $region15: #{tpu_custom_call.1} parent=11 // pred_region
          %230 = vsyncadd [#allocation8], 0
          %s231 = smul.addr %s29, 8
          %s232 = scalar_lea.hbm %s0, %s231
          %s234 = sshll.u32 %s232, 4
          %s235 = int_to_ptr.hbm [resolvable:$true] %s234
          %s236 = sshll.u32 [#allocation7], 4
          %s237 = int_to_ptr.vmem [resolvable:$true] %s236
          %239 = dma.hbm_to_vmem [thread:$0]  %s235, 128, %s237, [#allocation8]
        $region16: #{tpu_custom_call.1} parent=11 // pred_fallthru
          _
        // Predicated region
        $region17: #{tpu_custom_call.1} parent=11 // pred_check
          %p240 = pneg %p78
        $region18: #{tpu_custom_call.1} parent=11 // pred_check_branch
          %242 = sbr.rel (%p240) target = $region20
        $region19: #{tpu_custom_call.1} parent=11 // pred_region
          %244 = vsyncadd [#allocation11], 0
          %s246 = sshll.u32 %s1, 4
          %s247 = int_to_ptr.hbm [resolvable:$true] %s246
          %s248 = sshll.u32 [#allocation10], 4
          %s249 = int_to_ptr.vmem [resolvable:$true] %s248
          %251 = dma.hbm_to_vmem [thread:$0]  %s247, 128, %s249, [#allocation11]
        $region20: #{tpu_custom_call.1} parent=11 // pred_fallthru
          _
        // Predicated region
        $region21: #{tpu_custom_call.1} parent=11 // pred_check
          %p252 = pneg %p99
        $region22: #{tpu_custom_call.1} parent=11 // pred_check_branch
          %254 = sbr.rel (%p252) target = $region24
        $region23: #{tpu_custom_call.1} parent=11 // pred_region
          _
        $region24: #{tpu_custom_call.1} parent=11 // pred_fallthru
          _
        // Predicated region
        $region25: #{tpu_custom_call.1} parent=11 // pred_check
          %p255 = pneg %p120
        $region26: #{tpu_custom_call.1} parent=11 // pred_check_branch
          %257 = sbr.rel (%p255) target = $region28
        $region27: #{tpu_custom_call.1} parent=11 // pred_region
          _
        $region28: #{tpu_custom_call.1} parent=11 // pred_fallthru
          _
        // Predicated region
        $region29: #{tpu_custom_call.1} parent=11 // pred_check
          %p258 = pneg %p141
        $region30: #{tpu_custom_call.1} parent=11 // pred_check_branch
          %260 = sbr.rel (%p258) target = $region32
        $region31: #{tpu_custom_call.1} parent=11 // pred_region
          %262 = vsyncadd [#allocation11], 0
          %s263 = sshll.u32 %s4, 4
          %s264 = int_to_ptr.hbm [resolvable:$true] %s263
          %s265 = sshll.u32 [#allocation12], 4
          %s266 = int_to_ptr.vmem [resolvable:$true] %s265
          %271 = dma.hbm_to_vmem [thread:$0]  %s264, 2048, %s266, [#allocation11], 128, 128, 8
        $region32: #{tpu_custom_call.1} parent=11 // pred_fallthru
          _
        // Predicated region
        $region33: #{tpu_custom_call.1} parent=11 // pred_check
          %p272 = pneg %p162
        $region34: #{tpu_custom_call.1} parent=11 // pred_check_branch
          %274 = sbr.rel (%p272) target = $region36
        $region35: #{tpu_custom_call.1} parent=11 // pred_region
          _
        $region36: #{tpu_custom_call.1} parent=11 // pred_fallthru
          _
      $region12: #{tpu_custom_call.1} parent=5 // pred_fallthru
        _
      %p275 = scmp.lt.s32.totalorder %s19, 2
      // Predicated region
      $region37: #{tpu_custom_call.1} parent=5 // pred_check
        %p276 = pneg %p275
      $region38: #{tpu_custom_call.1} parent=5 // pred_check_branch
        %278 = sbr.rel (%p276) target = $region40
      $region39: #{tpu_custom_call.1} parent=5 // pred_region
        // Predicated region
        $region41: #{tpu_custom_call.1} parent=39 // pred_check
          %p279 = pneg %p184
        $region42: #{tpu_custom_call.1} parent=39 // pred_check_branch
          %281 = sbr.rel (%p279) target = $region44
        $region43: #{tpu_custom_call.1} parent=39 // pred_region
          %s282 = sand.u32 %s174, 1
          %s283 = scalar_lea.sflag [#allocation14], %s282
          %s284 = sand.u32 %s174, 1
          %s285 = smul.addr %s284, 8
          %s286 = scalar_lea.vmem [#allocation13], %s285
          %s287 = smul.u32 %s27, %s26
          %289 = vsyncadd %s283, 0
          %s290 = smul.addr %s287, 8
          %s291 = scalar_lea.hbm %s6, %s290
          %s293 = sshll.u32 %s291, 4
          %s294 = int_to_ptr.hbm [resolvable:$true] %s293
          %s295 = sshll.u32 %s286, 4
          %s296 = int_to_ptr.vmem [resolvable:$true] %s295
          %298 = dma.hbm_to_vmem [thread:$0]  %s294, 128, %s296, %s283
        $region44: #{tpu_custom_call.1} parent=39 // pred_fallthru
          _
      $region40: #{tpu_custom_call.1} parent=5 // pred_fallthru
        _
      %p299 = scmp.le.s32.totalorder 1, %s19
      %p300 = scmp.lt.s32.totalorder %s19, 3
      %p301 = pnand %p299, %p300
      %p302 = pneg %p301
      // Predicated region
      $region45: #{tpu_custom_call.1} parent=5 // pred_check
        _
      $region46: #{tpu_custom_call.1} parent=5 // pred_check_branch
        %304 = sbr.rel (%p301) target = $region48
      $region47: #{tpu_custom_call.1} parent=5 // pred_region
        %s305 = ssub.s32 %s19, 1
        // Predicated region
        $region49: #{tpu_custom_call.1} parent=47 // pred_check
          %p306 = pneg %p57
        $region50: #{tpu_custom_call.1} parent=47 // pred_check_branch
          %308 = sbr.rel (%p306) target = $region52
        $region51: #{tpu_custom_call.1} parent=47 // pred_region
          %310 = dma.done [#allocation8], 128
        $region52: #{tpu_custom_call.1} parent=47 // pred_fallthru
          _
        // Predicated region
        $region53: #{tpu_custom_call.1} parent=47 // pred_check
          %p311 = pneg %p78
        $region54: #{tpu_custom_call.1} parent=47 // pred_check_branch
          %313 = sbr.rel (%p311) target = $region56
        $region55: #{tpu_custom_call.1} parent=47 // pred_region
          %315 = dma.done [#allocation11], 128
        $region56: #{tpu_custom_call.1} parent=47 // pred_fallthru
          _
        // Predicated region
        $region57: #{tpu_custom_call.1} parent=47 // pred_check
          %p316 = pneg %p141
        $region58: #{tpu_custom_call.1} parent=47 // pred_check_branch
          %318 = sbr.rel (%p316) target = $region60
        $region59: #{tpu_custom_call.1} parent=47 // pred_region
          %320 = dma.done [#allocation11], 2048
        $region60: #{tpu_custom_call.1} parent=47 // pred_fallthru
          _
        %s321 = sand.u32 %s177, 1
        %s322 = scalar_lea.sflag [#allocation14], %s321
        %s323 = sand.u32 %s177, 1
        %s324 = smul.addr %s323, 8
        %s325 = scalar_lea.vmem [#allocation13], %s324
        // Predicated region
        $region61: #{tpu_custom_call.1} parent=47 // pred_check
          %p326 = pneg %p190
        $region62: #{tpu_custom_call.1} parent=47 // pred_check_branch
          %328 = sbr.rel (%p326) target = $region64
        $region63: #{tpu_custom_call.1} parent=47 // pred_region
          %330 = dma.done %s322, 128
        $region64: #{tpu_custom_call.1} parent=47 // pred_fallthru
          _
        %p331 = pneg %p57
        %p332 = pneg %p54
        %p333 = pneg %p78
        %p334 = pneg %p75
        %p335 = pneg %p99
        %p336 = pneg %p96
        %p337 = pneg %p120
        %p338 = pneg %p117
        %p339 = pneg %p141
        %p340 = pneg %p138
        %p341 = pneg %p162
        %p342 = pneg %p159
        %s343 = sand.u32 %s177, 1
        %s344 = scalar_lea.sflag [#allocation14], %s343
        %s345 = sand.u32 %s177, 1
        %s346 = smul.addr %s345, 8
        %s347 = scalar_lea.vmem [#allocation13], %s346
        %p348 = pneg %p190
        %p349 = pneg %p187
        %p350 = pneg %p211
        %p351 = pneg %p208
        %s352 = smul.u32 %s29, %s28
        %p353 = scmp.eq.s32.totalorder %s28, 0
        %p354 = scmp.eq.s32.totalorder %s29, 0
        %p355 = pnand %p353, %p354
        %p356 = pneg %p355
        // Predicated region
        $region65: #{tpu_custom_call.1} parent=47 // pred_check
          _
        $region66: #{tpu_custom_call.1} parent=47 // pred_check_branch
          %358 = sbr.rel (%p355) target = $region68
        $region67: #{tpu_custom_call.1} parent=47 // pred_region
          %359 = vst [vmem:[#allocation2] sm:$0x1] 0.0
          %360 = vst [vmem:[#allocation3] sm:$0x1] 0.0
        $region68: #{tpu_custom_call.1} parent=47 // pred_fallthru
          _
        // Predicated region
        $region69: #{tpu_custom_call.1} parent=47 // pred_check
          %p361 = pneg %p353
        $region70: #{tpu_custom_call.1} parent=47 // pred_check_branch
          %363 = sbr.rel (%p361) target = $region72
        $region71: #{tpu_custom_call.1} parent=47 // pred_region
          %v364 = vld [vmem:[#allocation7] sm:$0xff]
          %v365 = vld [vmem:[#allocation10] sm:$0xff]
          %vm366 = vcmask 64512
          %v368 = vsel %vm366, %v364, 0
          %370 = vmatpush.msra.mxu0 0.0
          %371 = vmatpush.msra.mxu0 0.0
          %372 = vmatpush.msra.mxu0 0.0
          %373 = vmatpush.msra.mxu0 0.0
          %374 = vmatpush.msra.mxu0 0.0
          %375 = vmatpush.msra.mxu0 0.0
          %376 = vmatpush.msra.mxu0 0.0
          %377 = vmatpush.msra.mxu0 0.0
          %378 = vmatpush.msra.mxu0 0.0
          %379 = vmatpush.msra.mxu0 0.0
          %380 = vmatpush.msra.mxu0 0.0
          %381 = vmatpush.msra.mxu0 0.0
          %382 = vmatpush.msra.mxu0 0.0
          %383 = vmatpush.msra.mxu0 0.0
          %384 = vmatpush.msra.mxu0 0.0
          %385 = vmatpush.msra.mxu0 %v365
          %386 = vmatmul.f32.gmra.mxu0 %v368
          %v387 = vpop.f32.mrf.mxu0
          %v388 = vadd.f32 0.0, %v387
          %389 = vdwg.mxu0
          %v390 = vld [vmem:[#allocation2] sm:$0x1]
          %v392 = vsel %vm366, 1.0, 0
          %394 = vmatpush.msra.mxu0 0.0
          %395 = vmatpush.msra.mxu0 0.0
          %396 = vmatpush.msra.mxu0 0.0
          %397 = vmatpush.msra.mxu0 0.0
          %398 = vmatpush.msra.mxu0 0.0
          %399 = vmatpush.msra.mxu0 0.0
          %400 = vmatpush.msra.mxu0 0.0
          %401 = vmatpush.msra.mxu0 0.0
          %402 = vmatpush.msra.mxu0 0.0
          %403 = vmatpush.msra.mxu0 0.0
          %404 = vmatpush.msra.mxu0 0.0
          %405 = vmatpush.msra.mxu0 0.0
          %406 = vmatpush.msra.mxu0 0.0
          %407 = vmatpush.msra.mxu0 0.0
          %408 = vmatpush.msra.mxu0 0.0
          %409 = vmatpush.msra.mxu0 %v388
          %410 = vmatmul.f32.gmra.mxu0 %v392
          %v411 = vpop.f32.mrf.mxu0
          %v412 = vadd.f32 0.0, %v411
          %413 = vdwg.mxu0
          %v414 = vadd.f32 %v390, %v412
          %415 = vst [vmem:[#allocation2] sm:$0x1] %v414
          %v416 = vld [vmem:[#allocation3] sm:$0x1]
          %v417 = vmul.f32 %v388, %v388
          %418 = vmatpush.msra.mxu0 0.0
          %419 = vmatpush.msra.mxu0 0.0
          %420 = vmatpush.msra.mxu0 0.0
          %421 = vmatpush.msra.mxu0 0.0
          %422 = vmatpush.msra.mxu0 0.0
          %423 = vmatpush.msra.mxu0 0.0
          %424 = vmatpush.msra.mxu0 0.0
          %425 = vmatpush.msra.mxu0 0.0
          %426 = vmatpush.msra.mxu0 0.0
          %427 = vmatpush.msra.mxu0 0.0
          %428 = vmatpush.msra.mxu0 0.0
          %429 = vmatpush.msra.mxu0 0.0
          %430 = vmatpush.msra.mxu0 0.0
          %431 = vmatpush.msra.mxu0 0.0
          %432 = vmatpush.msra.mxu0 0.0
          %433 = vmatpush.msra.mxu0 %v417
          %434 = vmatmul.f32.gmra.mxu0 %v392
          %v435 = vpop.f32.mrf.mxu0
          %v436 = vadd.f32 0.0, %v435
          %437 = vdwg.mxu0
          %v438 = vadd.f32 %v416, %v436
          %439 = vst [vmem:[#allocation3] sm:$0x1] %v438
        $region72: #{tpu_custom_call.1} parent=47 // pred_fallthru
          _
        %p440 = scmp.eq.s32.totalorder %s28, 1
        %p441 = pnand %p440, %p354
        %p442 = pneg %p441
        // Predicated region
        $region73: #{tpu_custom_call.1} parent=47 // pred_check
          _
        $region74: #{tpu_custom_call.1} parent=47 // pred_check_branch
          %444 = sbr.rel (%p441) target = $region76
        $region75: #{tpu_custom_call.1} parent=47 // pred_region
          %v445 = vld [vmem:[#allocation2] sm:$0x1]
          %v446 = vmul.f32 %v445, 0.125
          %v447 = vld [vmem:[#allocation3] sm:$0x1]
          %v448 = vmul.f32 %v447, 0.125
          %v449 = vmul.f32 %v446, %v446
          %v450 = vsub.f32 %v448, %v449
          %v451 = vmax.f32 %v450, 0.0
          %v452 = vld [vmem:[%s2] sm:$0x1]
          %v453 = vadd.f32 %v451, 1e-05
          %v454 = vrsqrt.pop %v453
          %v455 = vmul.f32 %v454, %v453
          %v456 = vmul.f32 %v455, %v454
          %v457 = vmul.f32 0.5, %v456
          %v458 = vsub.f32 1.5, %v457
          %v459 = vmul.f32 %v454, %v458
          %vm460 = vweird.f32 %v453
          %vm461 = vweird.f32 %v454
          %vm462 = vmor %vm460, %vm461
          %v463 = vsel %vm462, %v454, %v459
          %v464 = vmul.f32 %v452, %v463
          %465 = vst [vmem:[#allocation4] sm:$0x1] %v464
          %v466 = vld [vmem:[%s3] sm:$0x1]
          %v467 = vmul.f32 %v446, %v464
          %v468 = vsub.f32 %v466, %v467
          %469 = vst [vmem:[#allocation5] sm:$0x1] %v468
          %470 = vst [vmem:[#allocation6] sm:$0x1] 0.0
        $region76: #{tpu_custom_call.1} parent=47 // pred_fallthru
          _
        // Predicated region
        $region77: #{tpu_custom_call.1} parent=47 // pred_check
          %p471 = pneg %p440
        $region78: #{tpu_custom_call.1} parent=47 // pred_check_branch
          %473 = sbr.rel (%p471) target = $region80
        $region79: #{tpu_custom_call.1} parent=47 // pred_region
          %v474 = vld [vmem:[#allocation7] sm:$0xff]
          %v475 = vld [vmem:[#allocation10] sm:$0xff]
          %vm476 = vcmask 64512
          %v478 = vsel %vm476, %v474, 0
          %480 = vmatpush.msra.mxu0 0.0
          %481 = vmatpush.msra.mxu0 0.0
          %482 = vmatpush.msra.mxu0 0.0
          %483 = vmatpush.msra.mxu0 0.0
          %484 = vmatpush.msra.mxu0 0.0
          %485 = vmatpush.msra.mxu0 0.0
          %486 = vmatpush.msra.mxu0 0.0
          %487 = vmatpush.msra.mxu0 0.0
          %488 = vmatpush.msra.mxu0 0.0
          %489 = vmatpush.msra.mxu0 0.0
          %490 = vmatpush.msra.mxu0 0.0
          %491 = vmatpush.msra.mxu0 0.0
          %492 = vmatpush.msra.mxu0 0.0
          %493 = vmatpush.msra.mxu0 0.0
          %494 = vmatpush.msra.mxu0 0.0
          %495 = vmatpush.msra.mxu0 %v475
          %496 = vmatmul.f32.gmra.mxu0 %v478
          %v497 = vpop.f32.mrf.mxu0
          %v498 = vadd.f32 0.0, %v497
          %499 = vdwg.mxu0
          %v500 = vld [vmem:[#allocation4] sm:$0x1]
          %v502 = vperm.slane %v500, 0
          %v504 = vmul.f32 %v498, %v502
          %v505 = vld [vmem:[#allocation5] sm:$0x1]
          %v507 = vperm.slane %v505, 0
          %v509 = vadd.f32 %v504, %v507
          %v510 = vmax.f32 %v509, 0.0
          %v511 = vld [vmem:[#allocation12] sm:$0xff]
          %v512 = vld [vmem:[#allocation12 + $0x8] sm:$0xff]
          %v513 = vld [vmem:[#allocation12 + $0x10] sm:$0xff]
          %v514 = vld [vmem:[#allocation12 + $0x18] sm:$0xff]
          %v515 = vld [vmem:[#allocation12 + $0x20] sm:$0xff]
          %v516 = vld [vmem:[#allocation12 + $0x28] sm:$0xff]
          %v517 = vld [vmem:[#allocation12 + $0x30] sm:$0xff]
          %v518 = vld [vmem:[#allocation12 + $0x38] sm:$0xff]
          %v519 = vld [vmem:[#allocation12 + $0x40] sm:$0xff]
          %v520 = vld [vmem:[#allocation12 + $0x48] sm:$0xff]
          %v521 = vld [vmem:[#allocation12 + $0x50] sm:$0xff]
          %v522 = vld [vmem:[#allocation12 + $0x58] sm:$0xff]
          %v523 = vld [vmem:[#allocation12 + $0x60] sm:$0xff]
          %v524 = vld [vmem:[#allocation12 + $0x68] sm:$0xff]
          %v525 = vld [vmem:[#allocation12 + $0x70] sm:$0xff]
          %v526 = vld [vmem:[#allocation12 + $0x78] sm:$0xff]
          %v527 = vld [vmem:[%s5] sm:$0x1]
          %v529 = vperm.slane %v527, 0
          %531 = vmatpush.msra.mxu0 %v526
          %532 = vmatpush.msra.mxu0 %v525
          %533 = vmatpush.msra.mxu0 %v524
          %534 = vmatpush.msra.mxu0 %v523
          %535 = vmatpush.msra.mxu0 %v522
          %536 = vmatpush.msra.mxu0 %v521
          %537 = vmatpush.msra.mxu0 %v520
          %538 = vmatpush.msra.mxu0 %v519
          %539 = vmatpush.msra.mxu0 %v518
          %540 = vmatpush.msra.mxu0 %v517
          %541 = vmatpush.msra.mxu0 %v516
          %542 = vmatpush.msra.mxu0 %v515
          %543 = vmatpush.msra.mxu0 %v514
          %544 = vmatpush.msra.mxu0 %v513
          %545 = vmatpush.msra.mxu0 %v512
          %546 = vmatpush.msra.mxu0 %v511
          %547 = vmatmul.f32.gmra.mxu0 %v510
          %v548 = vpop.f32.mrf.mxu0
          %v549 = vadd.f32 %v529, %v548
          %550 = vdwg.mxu0
          %551 = vmax.xlane.f32.xlu0 %v549
          %v552 = vpop.xlane.xlu0 %551
          %v553 = vsub.f32 %v549, %v552
          %v554 = vmul.f32 %v553, 1.442695
          %v555 = vpow.pop %v554
          %556 = vadd.xlane.f32.xlu0 %v555
          %v557 = vpop.xlane.xlu0 %556
          %v558 = vlog2.pop %v557
          %v559 = vmul.f32 %v558, 0.6931472
          %v560 = vsub.f32 %v553, %v559
          %v561 = vld [vmem:[%s325] sm:$0xff]
          %v562 = vmul.f32 %v561, %v560
          %v563 = vld [vmem:[#allocation6] sm:$0x1]
          %v565 = vsel %vm476, 1.0, 0
          %567 = vmatpush.msra.mxu0 0.0
          %568 = vmatpush.msra.mxu0 0.0
          %569 = vmatpush.msra.mxu0 0.0
          %570 = vmatpush.msra.mxu0 0.0
          %571 = vmatpush.msra.mxu0 0.0
          %572 = vmatpush.msra.mxu0 0.0
          %573 = vmatpush.msra.mxu0 0.0
          %574 = vmatpush.msra.mxu0 0.0
          %575 = vmatpush.msra.mxu0 0.0
          %576 = vmatpush.msra.mxu0 0.0
          %577 = vmatpush.msra.mxu0 0.0
          %578 = vmatpush.msra.mxu0 0.0
          %579 = vmatpush.msra.mxu0 0.0
          %580 = vmatpush.msra.mxu0 0.0
          %581 = vmatpush.msra.mxu0 0.0
          %582 = vmatpush.msra.mxu0 %v562
          %583 = vmatmul.f32.gmra.mxu0 %v565
          %v584 = vpop.f32.mrf.mxu0
          %v585 = vadd.f32 0.0, %v584
          %586 = vdwg.mxu0
          %v587 = vadd.f32 %v563, %v585
          %588 = vst [vmem:[#allocation6] sm:$0x1] %v587
        $region80: #{tpu_custom_call.1} parent=47 // pred_fallthru
          _
        // Predicated region
        $region81: #{tpu_custom_call.1} parent=47 // pred_check
          _
        $region82: #{tpu_custom_call.1} parent=47 // pred_check_branch
          %590 = sbr.rel (%p441) target = $region84
        $region83: #{tpu_custom_call.1} parent=47 // pred_region
          %v591 = vld [vmem:[#allocation6] sm:$0x1]
          %vm592 = vcmask 1040384
          %v593 = vsel %vm592, %v591, 0.0
          %594 = vadd.xlane.f32.xlu0 %v593
          %v595 = vpop.xlane.xlu0 %594
          %v596 = vrot.slane %v595, 4
          %v597 = vadd.f32 %v595, %v596
          %v598 = vrot.slane %v597, 2
          %v599 = vadd.f32 %v597, %v598
          %v600 = vrot.slane %v599, 1
          %v601 = vadd.f32 %v599, %v600
          %s602 = vtos %v601
          %s603 = smul.f32 %s602, -0.125
          %s604 = scalar_lea.smem [#allocation15], 0
          %605 = sst [smem:[%s604]] %s603
        $region84: #{tpu_custom_call.1} parent=47 // pred_fallthru
          _
        // Predicated region
        $region85: #{tpu_custom_call.1} parent=47 // pred_check
          %p606 = pneg %p208
        $region86: #{tpu_custom_call.1} parent=47 // pred_check_branch
          %608 = sbr.rel (%p606) target = $region88
        $region87: #{tpu_custom_call.1} parent=47 // pred_region
          %610 = vsyncadd [#allocation9], 0
          %s612 = sshll.u32 %s7, 4
          %s613 = int_to_ptr.hbm [resolvable:$true] %s612
          %615 = dma.smem_to_hbm [#allocation15], 16, %s613, [#allocation9]
        $region88: #{tpu_custom_call.1} parent=47 // pred_fallthru
          _
        // Predicated region
        $region89: #{tpu_custom_call.1} parent=47 // pred_check
          %p616 = pneg %p208
        $region90: #{tpu_custom_call.1} parent=47 // pred_check_branch
          %618 = sbr.rel (%p616) target = $region92
        $region91: #{tpu_custom_call.1} parent=47 // pred_region
          %620 = dma.done [#allocation9], 16
        $region92: #{tpu_custom_call.1} parent=47 // pred_fallthru
          _
        %621 = sfence
      $region48: #{tpu_custom_call.1} parent=5 // pred_fallthru
        _
      %p622 = scmp.le.s32.totalorder 2, %s19
      // Predicated region
      $region93: #{tpu_custom_call.1} parent=5 // pred_check
        %p623 = pneg %p622
      $region94: #{tpu_custom_call.1} parent=5 // pred_check_branch
        %625 = sbr.rel (%p623) target = $region96
      $region95: #{tpu_custom_call.1} parent=5 // pred_region
        %s626 = ssub.s32 %s19, 2
      $region96: #{tpu_custom_call.1} parent=5 // pred_fallthru
        _
    $region6: #{tpu_custom_call.1} parent=1 // loop_footer
      %s23 = sadd.s32 1, %s19
    $region7: #{tpu_custom_call.1} parent=1 // loop_footer_branch
      %18 = sbr.rel target = $region3
    $region8: #{tpu_custom_call.1} parent=1 // loop_exit
      _
    %627 = vsyncpa [#allocation8], 1
    %s628 = scalar_lea.sflag [#allocation8], 1
    %629 = vsyncpa %s628, 1
    %630 = vsyncpa [#allocation11], 1
    %631 = vsyncpa [#allocation14], 1
    %s632 = scalar_lea.sflag [#allocation14], 1
    %633 = vsyncpa %s632, 1
    %634 = vsyncpa [#allocation9], 1
    %s635 = scalar_lea.sflag [#allocation9], 1
    %636 = vsyncpa %s635, 1

</llo_original>
